<compile_context>
chip_gen: v6e
topology: v6e:2x2x1
jax: 0.10.0
libtpu: 0.0.40
codegen_flags: <defaults>
</compile_context>

<pallas_src>
import functools
import math

import jax
import jax.numpy as jnp
from jax import lax
from jax.experimental import pallas as pl
from jax.experimental.pallas import tpu as pltpu


# ---------------------------------------------------------------------------
# Kernel: one (i, j, k) tile of y = x @ W^T + b with an f32 VMEM accumulator.
# ---------------------------------------------------------------------------

def _linear_bias_kernel(x_ref, w_ref, b_ref, o_ref, acc_ref):
    k = pl.program_id(2)
    nk = pl.num_programs(2)

    @pl.when(k == 0)
    def _init():
        acc_ref[...] = jnp.zeros_like(acc_ref)

    # W is kept in torch layout (D_out, D_in): contract x dim 1 with W dim 1, so no
    # transpose is materialized anywhere.  MXU accumulates in f32.
    acc_ref[...] += lax.dot_general(
        x_ref[...], w_ref[...],
        dimension_numbers=(((1,), (1,)), ((), ())),
        preferred_element_type=jnp.float32)

    @pl.when(k == nk - 1)
    def _finalize():
        o_ref[...] = (acc_ref[...] + b_ref[...]).astype(o_ref.dtype)


# ---------------------------------------------------------------------------
# Tiled linear wrapper (used by both the eval path and the noisy training path).
# ---------------------------------------------------------------------------

def _round_up(v, m):
    return (v + m - 1) // m * m


def _linear_pallas(x, w, b, *, tile_m, tile_n, tile_k, compute_dtype, out_dtype,
                   vmem_limit_bytes=None):
    """y = x @ W^T + b.  x: (B, K); w: (N, K) torch layout; b: (N,)."""
    B, K = x.shape
    N = w.shape[0]

    # (8,128)-aligned tiles, clamped to the rounded-up problem size.
    tm = min(tile_m, _round_up(B, 8))
    tn = min(tile_n, _round_up(N, 128))
    tk = min(tile_k, _round_up(K, 128))
    Bp, Np, Kp = _round_up(B, tm), _round_up(N, tn), _round_up(K, tk)

    # v7x has 2 TensorCores: if both parallel grid axes collapse to a single tile,
    # halve tn so dimension_semantics=("parallel", ...) can actually shard the work.
    if Bp // tm == 1 and Np // tn == 1 and tn >= 256 and tn % 256 == 0:
        tn //= 2
        Np = _round_up(N, tn)

    # Cast BEFORE the pallas_call so the HBM->VMEM DMAs are already in compute_dtype
    # (halves x/W traffic for bf16).  Bias stays f32 (added after f32 accumulation).
    xc = x.astype(compute_dtype)
    wc = w.astype(compute_dtype)
    b2 = b.astype(jnp.float32).reshape(1, N)

    if (Bp, Kp) != (B, K):
        xc = jnp.pad(xc, ((0, Bp - B), (0, Kp - K)))
    if (Np, Kp) != (N, K):
        wc = jnp.pad(wc, ((0, Np - N), (0, Kp - K)))
    if Np != N:
        b2 = jnp.pad(b2, ((0, 0), (0, Np - N)))

    grid = (Bp // tm, Np // tn, Kp // tk)
    grid_spec = pltpu.PrefetchScalarGridSpec(
        num_scalar_prefetch=0,
        grid=grid,
        in_specs=[
            pl.BlockSpec((tm, tk), lambda i, j, k: (i, k)),   # x tile
            pl.BlockSpec((tn, tk), lambda i, j, k: (j, k)),   # W tile (torch layout)
            pl.BlockSpec((1, tn), lambda i, j, k: (0, j)),    # bias tile
        ],
        out_specs=pl.BlockSpec((tm, tn), lambda i, j, k: (i, j)),
        scratch_shapes=[pltpu.VMEM((tm, tn), jnp.float32)],
    )
    compiler_params = pltpu.CompilerParams(
        dimension_semantics=("parallel", "parallel", "arbitrary"),
        vmem_limit_bytes=vmem_limit_bytes)

    out = pl.pallas_call(
        _linear_bias_kernel,
        out_shape=jax.ShapeDtypeStruct((Bp, Np), out_dtype),
        grid_spec=grid_spec,
        compiler_params=compiler_params,
    )(xc, wc, b2)
    return out[:B, :N]


# ---------------------------------------------------------------------------
# NoisyWeightWrapper forward.
# ---------------------------------------------------------------------------

def noisy_weight_linear(x, w, b, *, noise_scale=0.01, training=True, key=None,
                        tile_m=512, tile_n=512, tile_k=1024,
                        compute_dtype=jnp.bfloat16, out_dtype=None,
                        vmem_limit_bytes=None):
    """NoisyWeightWrapper(Linear(D_in, D_out)).forward.

    x: (B, D_in); w: (D_out, D_in) torch-layout weight; b: (D_out,) bias.
    Training mode: y = x @ (W + s*eps_W)^T + (b + s*eps_b) with eps drawn once per call.
    Eval mode (or noise_scale == 0): plain linear.
    """
    out_dtype = x.dtype if out_dtype is None else out_dtype
    add_noise = bool(training) and float(noise_scale) != 0.0

    if add_noise:
        if key is None:
            key = jax.random.PRNGKey(0)
        kw, kb = jax.random.split(key)
        # One perturbation per forward pass (same realization for every batch tile,
        # independent of the kernel tiling).  Noise FMA is done in f32, then the
        # perturbed weight is streamed to the matmul kernel in compute_dtype.
        eps_w = jax.random.normal(kw, w.shape, jnp.float32)
        eps_b = jax.random.normal(kb, b.shape, jnp.float32)
        w_eff = w.astype(jnp.float32) + jnp.float32(noise_scale) * eps_w
        b_eff = b.astype(jnp.float32) + jnp.float32(noise_scale) * eps_b
    else:
        w_eff = w
        b_eff = b

    return _linear_pallas(x, w_eff, b_eff,
                          tile_m=tile_m, tile_n=tile_n, tile_k=tile_k,
                          compute_dtype=compute_dtype, out_dtype=out_dtype,
                          vmem_limit_bytes=vmem_limit_bytes)


if __name__ == "__main__":
    root = jax.random.PRNGKey(0)
    k_x, k_w, k_b, k_n1, k_n2 = jax.random.split(root, 5)

    B, D_in, D_out = 128, 256, 256            # small, lane-dense / MXU-aligned
    noise_scale = 0.01
    # Small tile overrides so the demo exercises a real 3-D grid: (2, 2, 2).
    tiles = dict(tile_m=64, tile_n=128, tile_k=128)

    bound = 1.0 / math.sqrt(D_in)              # torch.nn.Linear default init
    w = jax.random.uniform(k_w, (D_out, D_in), jnp.float32, -bound, bound)
    b = jax.random.uniform(k_b, (D_out,), jnp.float32, -bound, bound)
    x = jax.random.normal(k_x, (B, D_in), jnp.float32)

    y_clean = x @ w.T + b                      # pure-JAX reference of the noiseless linear

    # --- eval mode (wrapper's early-return path), f32 compute -------------------------
    y_eval = jax.block_until_ready(
        noisy_weight_linear(x, w, b, noise_scale=noise_scale, training=False,
                            compute_dtype=jnp.float32, **tiles))
    assert y_eval.shape == (B, D_out)
    assert jnp.allclose(y_eval, y_clean, atol=2e-4, rtol=2e-4)

    # --- training mode, noise_scale=0: no-noise fast path, validates grid/accumulator --
    y0 = jax.block_until_ready(
        noisy_weight_linear(x, w, b, noise_scale=0.0, training=True,
                            compute_dtype=jnp.float32, **tiles))
    assert jnp.allclose(y0, y_clean, atol=2e-4, rtol=2e-4)

    # --- training mode with noise (f32 compute for precise statistics) -----------------
    fwd = functools.partial(noisy_weight_linear, x, w, b, noise_scale=noise_scale,
                            training=True, compute_dtype=jnp.float32, **tiles)
    y1 = jax.block_until_ready(fwd(key=k_n1))
    y1_again = jax.block_until_ready(fwd(key=k_n1))
    y2 = jax.block_until_ready(fwd(key=k_n2))
    assert bool(jnp.all(jnp.isfinite(y1)))
    assert bool(jnp.array_equal(y1, y1_again))        # same key  -> identical noisy forward
    assert not bool(jnp.array_equal(y1, y2))          # new key   -> new noise

    # Noise realization must be independent of the tiling (same key, different tiles).
    y1_other_tiles = jax.block_until_ready(
        noisy_weight_linear(x, w, b, noise_scale=noise_scale, training=True, key=k_n1,
                            compute_dtype=jnp.float32,
                            tile_m=128, tile_n=256, tile_k=256))
    assert jnp.allclose(y1, y1_other_tiles, atol=1e-4, rtol=1e-4)

    # Perturbation y_noisy - y_clean = x @ (s*eps_W)^T + s*eps_b has per-element std
    # s * sqrt(||x_row||^2 + 1); check the generated noise magnitude.
    dev = y1 - y_clean
    expected_std = noise_scale * jnp.sqrt(jnp.mean(jnp.sum(x * x, axis=1) + 1.0))
    ratio = float(jnp.std(dev) / expected_std)
    assert 0.85 < ratio < 1.15, f"noise std ratio {ratio}"

    # --- default bf16 DMA + MXU path (f32 accumulation), loose check -------------------
    y_bf16 = jax.block_until_ready(
        noisy_weight_linear(x, w, b, noise_scale=0.0, training=True))   # default tiles/bf16
    assert y_bf16.shape == (B, D_out)
    assert jnp.allclose(y_bf16, y_clean, atol=5e-2, rtol=5e-2)

    print("KERNEL_OK")
</pallas_src>

<mosaic_0001>
module attributes {stable_mosaic.version = 11 : i64} {
  func.func @_linear_bias_kernel(%arg0: i32, %arg1: i32, %arg2: i32, %arg3: memref<64x128xf32, #tpu.memory_space<vmem>>, %arg4: memref<128x128xf32, #tpu.memory_space<vmem>>, %arg5: memref<1x128xf32, #tpu.memory_space<vmem>>, %arg6: memref<64x128xf32, #tpu.memory_space<vmem>>, %arg7: memref<64x128xf32, #tpu.memory_space<vmem>>) attributes {dimension_semantics = [#tpu.dimension_semantics<parallel>, #tpu.dimension_semantics<parallel>, #tpu.dimension_semantics<arbitrary>], iteration_bounds = array<i64: 2, 2, 2>, scalar_prefetch = 0 : i64, scratch_operands = 1 : i64, tpu.core_type = #tpu.core_type<tc>, window_params = [{transform_indices = @transform_0, window_bounds = array<i64: 64, 128>}, {transform_indices = @transform_1, window_bounds = array<i64: 128, 128>}, {transform_indices = @transform_2, window_bounds = array<i64: 1, 128>}, {transform_indices = @transform_3, window_bounds = array<i64: 64, 128>}]} {
    %c0_i32 = arith.constant 0 : i32
    %0 = arith.cmpi eq, %arg2, %c0_i32 : i32
    %1 = arith.extui %0 : i1 to i32
    %c0_i32_0 = arith.constant 0 : i32
    %2 = arith.cmpi ne, %1, %c0_i32_0 : i32
    scf.if %2 {
      %cst_9 = arith.constant 0.000000e+00 : f32
      %12 = vector.broadcast %cst_9 : f32 to vector<64x128xf32>
      %c0_10 = arith.constant 0 : index
      %c0_11 = arith.constant 0 : index
      %13 = vector.load %arg7[%c0_10, %c0_11] : memref<64x128xf32, #tpu.memory_space<vmem>>, vector<64x128xf32>
      tpu.vector_store %arg7[%c0_10, %c0_11], %12 {strides = array<i32>} : memref<64x128xf32, #tpu.memory_space<vmem>>, vector<64x128xf32>,
    } else {
    }
    %c0 = arith.constant 0 : index
    %c0_1 = arith.constant 0 : index
    %3 = vector.load %arg7[%c0, %c0_1] : memref<64x128xf32, #tpu.memory_space<vmem>>, vector<64x128xf32>
    %c0_2 = arith.constant 0 : index
    %c0_3 = arith.constant 0 : index
    %4 = vector.load %arg3[%c0_2, %c0_3] : memref<64x128xf32, #tpu.memory_space<vmem>>, vector<64x128xf32>
    %c0_4 = arith.constant 0 : index
    %c0_5 = arith.constant 0 : index
    %5 = vector.load %arg4[%c0_4, %c0_5] : memref<128x128xf32, #tpu.memory_space<vmem>>, vector<128x128xf32>
    %cst = arith.constant dense<0.000000e+00> : vector<64x128xf32>
    %6 = tpu.matmul %4, %5, %cst {dimension_numbers = #tpu.dot_dimension_numbers<[1], [1], [0], [0], [0, 0, 1, 0], [], []>} : vector<64x128xf32>, vector<128x128xf32>, vector<64x128xf32> -> vector<64x128xf32>
    %7 = arith.addf %3, %6 : vector<64x128xf32>
    %c0_6 = arith.constant 0 : index
    %c0_7 = arith.constant 0 : index
    %8 = vector.load %arg7[%c0_6, %c0_7] : memref<64x128xf32, #tpu.memory_space<vmem>>, vector<64x128xf32>
    tpu.vector_store %arg7[%c0_6, %c0_7], %7 {strides = array<i32>} : memref<64x128xf32, #tpu.memory_space<vmem>>, vector<64x128xf32>,
    %c1_i32 = arith.constant 1 : i32
    %9 = arith.cmpi eq, %arg2, %c1_i32 : i32
    %10 = arith.extui %9 : i1 to i32
    %c0_i32_8 = arith.constant 0 : i32
    %11 = arith.cmpi ne, %10, %c0_i32_8 : i32
    scf.if %11 {
      %c0_9 = arith.constant 0 : index
      %c0_10 = arith.constant 0 : index
      %12 = vector.load %arg7[%c0_9, %c0_10] : memref<64x128xf32, #tpu.memory_space<vmem>>, vector<64x128xf32>
      %c0_11 = arith.constant 0 : index
      %c0_12 = arith.constant 0 : index
      %13 = vector.load %arg5[%c0_11, %c0_12] : memref<1x128xf32, #tpu.memory_space<vmem>>, vector<1x128xf32>
      %14 = vector.broadcast %13 : vector<1x128xf32> to vector<64x128xf32>
      %15 = arith.addf %12, %14 : vector<64x128xf32>
      %c0_13 = arith.constant 0 : index
      %c0_14 = arith.constant 0 : index
      %16 = vector.load %arg6[%c0_13, %c0_14] : memref<64x128xf32, #tpu.memory_space<vmem>>, vector<64x128xf32>
      tpu.vector_store %arg6[%c0_13, %c0_14], %15 {strides = array<i32>} : memref<64x128xf32, #tpu.memory_space<vmem>>, vector<64x128xf32>,
    } else {
    }
    return
  }
  func.func @transform_0(%arg0: i32, %arg1: i32, %arg2: i32) -> (i32, i32) {
    %c0_i32 = arith.constant 0 : i32
    return %arg0, %arg2 : i32, i32
  }
  func.func @transform_1(%arg0: i32, %arg1: i32, %arg2: i32) -> (i32, i32) {
    %c0_i32 = arith.constant 0 : i32
    return %arg1, %arg2 : i32, i32
  }
  func.func @transform_2(%arg0: i32, %arg1: i32, %arg2: i32) -> (i32, i32) {
    %c0_i32 = arith.constant 0 : i32
    %c0_i32_0 = arith.constant 0 : i32
    return %c0_i32, %arg1 : i32, i32
  }
  func.func @transform_3(%arg0: i32, %arg1: i32, %arg2: i32) -> (i32, i32) {
    %c0_i32 = arith.constant 0 : i32
    return %arg0, %arg1 : i32, i32
  }
}

</mosaic_0001>

<llo_original>
// kernel: tpu_custom_call.1
$region0: #{tpu_custom_call.1}
  #allocation0 [shape = 'u32[]', space=smem, size = 0x4, offset = 0x4, fixed_abs, tag = 'smem constant byte address 0x4 - core index']
  #allocation1 [shape = 'u32[144,128]{1,0:T(1,128)}', space=vmem, size = 0x12000, scoped, tag = 'internal scratch']
  #allocation2 [shape = 'f32[64,128]{1,0:T(8,128)}', space=vmem, size = 0x8000, scoped, tag = 'scratch operand']
  %s0 = inlined_call_operand.hbm [shape: f32[128,256], index: 0, kind: input, shape index: {}]
  %s1 = inlined_call_operand.hbm [shape: f32[256,256], index: 1, kind: input, shape index: {}]
  %s2 = inlined_call_operand.vmem [shape: f32[1,256], index: 2, kind: input, shape index: {}]
  %s3 = inlined_call_operand.hbm [shape: f32[128,256], index: 3, kind: output, shape index: {}]
  %s4 = sld [smem:[#allocation0]]
  $region61: #{tpu_custom_call.1} parent=0
    _
  %s6 = ssub.s32 1, %s4
  %s7 = scalar_select 0, %s6, %s4
  $region1: #{tpu_custom_call.1} parent=0
    #allocation3 [shape = 'u8[65536]{0}', space=vmem, size = 0x10000, scoped, tag = 'input window, operand 0']
    #allocation4 [shape = 's32[2]{0}', space=sflag, size = 0x8, scoped, tag = 'scoped memory for tpu_custom_call.1']
    #allocation5 [shape = 's32[2]{0}', space=sflag, size = 0x8, scoped, tag = 'scoped memory for tpu_custom_call.1']
    #allocation6 [shape = 'u8[131072]{0}', space=vmem, size = 0x20000, scoped, tag = 'input window, operand 1']
    #allocation7 [shape = 's32[2]{0}', space=sflag, size = 0x8, scoped, tag = 'scoped memory for tpu_custom_call.1']
    #allocation8 [shape = 'u8[65536]{0}', space=vmem, size = 0x10000, scoped, tag = 'output window, operand 0']
    %8 = vsyncpa [#allocation4], 0
    %s9 = scalar_lea.sflag [#allocation4], 1
    %10 = vsyncpa %s9, 0
    %11 = vsyncpa [#allocation7], 0
    %s12 = scalar_lea.sflag [#allocation7], 1
    %13 = vsyncpa %s12, 0
    %14 = vsyncpa [#allocation5], 0
    %s15 = scalar_lea.sflag [#allocation5], 1
    %16 = vsyncpa %s15, 0
    loop: start=0, step=1, limit=10
    $region2: #{tpu_custom_call.1} parent=1 // loop_pre_header
      _
    $region3: #{tpu_custom_call.1} parent=1 // loop_header
      %s18 = sphi 0, %s22
      %p19 = scmp.ge.s32.totalorder %s18, 10
      %s25 = sphi 0, %s44
      %s26 = sphi 0, %s40
      %s27 = sphi 0, %s36
      %s28 = sphi 0, %s25
      %s29 = sphi 0, %s26
      %s30 = sphi 0, %s27
      %s31 = sphi 0, %s28
      %s32 = sphi 0, %s29
      %s33 = sphi 0, %s30
      %s49 = sphi 0, %s51
      %s52 = sphi 0, %s49
      %s53 = sphi 0, %s52
      %s69 = sphi 0, %s53
      %s77 = sphi 0, %s79
      %s80 = sphi 0, %s77
      %s81 = sphi 0, %s80
      %s97 = sphi 0, %s81
      %s103 = sphi 0, %s105
      %s106 = sphi 0, %s103
      %s107 = sphi 0, %s106
      %s123 = sphi 0, %s107
      %s131 = sphi 0, %s133
      %s134 = sphi 0, %s131
      %s135 = sphi 0, %s134
      %s151 = sphi 0, %s135
    $region4: #{tpu_custom_call.1} parent=1 // loop_header_branch
      %21 = sbr.rel (%p19) target = $region8
    $region5: #{tpu_custom_call.1} parent=1 // loop_body
      %s23 = ssub.s32 %s18, 1
      %s24 = ssub.s32 %s18, 2
      %s34 = sadd.s32 1, %s27
      %p35 = scmp.ge.s32.totalorder %s34, 2
      %s36 = scalar_select %p35, 0, %s34
      %s37 = sadd.s32 1, %s26
      %s38 = scalar_select %p35, %s37, %s26
      %p39 = scmp.ge.s32.totalorder %s38, 2
      %s40 = scalar_select %p39, 0, %s38
      %s41 = sadd.s32 1, %s25
      %s42 = scalar_select %p39, %s41, %s25
      %p43 = scmp.ge.s32.totalorder %s42, 2
      %s44 = scalar_select %p43, 0, %s42
      %s45 = ssub.s32 %s25, %s44
      %s46 = ssub.s32 %s27, %s36
      %s47 = sor.u32 %s45, %s46
      %p48 = scmp.eq.s32.totalorder %s47, 0
      %s50 = sadd.s32 %s49, 1
      %s51 = scalar_select %p48, %s49, %s50
      %p54 = pneg %p48
      %p55 = scmp.eq.s32.totalorder %s18, 7
      %p56 = por %p54, %p55
      %p57 = scmp.ne.s32.totalorder %s49, %s52
      %p58 = scmp.eq.s32.totalorder %s18, 0
      %p59 = por %p57, %p58
      %p60 = scmp.ne.s32.totalorder %s49, %s52
      %p61 = scmp.eq.s32.totalorder %s23, 7
      %p62 = por %p60, %p61
      %p63 = scmp.ne.s32.totalorder %s52, %s53
      %p64 = scmp.eq.s32.totalorder %s23, 0
      %p65 = por %p63, %p64
      %p66 = scmp.ne.s32.totalorder %s52, %s53
      %p67 = scmp.eq.s32.totalorder %s24, 7
      %p68 = por %p66, %p67
      %p70 = scmp.ne.s32.totalorder %s53, %s69
      %p71 = scmp.eq.s32.totalorder %s24, 0
      %p72 = por %p70, %p71
      %s73 = ssub.s32 %s26, %s40
      %s74 = ssub.s32 %s27, %s36
      %s75 = sor.u32 %s73, %s74
      %p76 = scmp.eq.s32.totalorder %s75, 0
      %s78 = sadd.s32 %s77, 1
      %s79 = scalar_select %p76, %s77, %s78
      %p82 = pneg %p76
      %p83 = scmp.eq.s32.totalorder %s18, 7
      %p84 = por %p82, %p83
      %p85 = scmp.ne.s32.totalorder %s77, %s80
      %p86 = scmp.eq.s32.totalorder %s18, 0
      %p87 = por %p85, %p86
      %p88 = scmp.ne.s32.totalorder %s77, %s80
      %p89 = scmp.eq.s32.totalorder %s23, 7
      %p90 = por %p88, %p89
      %p91 = scmp.ne.s32.totalorder %s80, %s81
      %p92 = scmp.eq.s32.totalorder %s23, 0
      %p93 = por %p91, %p92
      %p94 = scmp.ne.s32.totalorder %s80, %s81
      %p95 = scmp.eq.s32.totalorder %s24, 7
      %p96 = por %p94, %p95
      %p98 = scmp.ne.s32.totalorder %s81, %s97
      %p99 = scmp.eq.s32.totalorder %s24, 0
      %p100 = por %p98, %p99
      %s101 = ssub.s32 %s26, %s40
      %p102 = scmp.eq.s32.totalorder %s101, 0
      %s104 = sadd.s32 %s103, 1
      %s105 = scalar_select %p102, %s103, %s104
      %p108 = pneg %p102
      %p109 = scmp.eq.s32.totalorder %s18, 7
      %p110 = por %p108, %p109
      %p111 = scmp.ne.s32.totalorder %s103, %s106
      %p112 = scmp.eq.s32.totalorder %s18, 0
      %p113 = por %p111, %p112
      %p114 = scmp.ne.s32.totalorder %s103, %s106
      %p115 = scmp.eq.s32.totalorder %s23, 7
      %p116 = por %p114, %p115
      %p117 = scmp.ne.s32.totalorder %s106, %s107
      %p118 = scmp.eq.s32.totalorder %s23, 0
      %p119 = por %p117, %p118
      %p120 = scmp.ne.s32.totalorder %s106, %s107
      %p121 = scmp.eq.s32.totalorder %s24, 7
      %p122 = por %p120, %p121
      %p124 = scmp.ne.s32.totalorder %s107, %s123
      %p125 = scmp.eq.s32.totalorder %s24, 0
      %p126 = por %p124, %p125
      %s127 = ssub.s32 %s25, %s44
      %s128 = ssub.s32 %s26, %s40
      %s129 = sor.u32 %s127, %s128
      %p130 = scmp.eq.s32.totalorder %s129, 0
      %s132 = sadd.s32 %s131, 1
      %s133 = scalar_select %p130, %s131, %s132
      %p136 = pneg %p130
      %p137 = scmp.eq.s32.totalorder %s18, 7
      %p138 = por %p136, %p137
      %p139 = scmp.ne.s32.totalorder %s131, %s134
      %p140 = scmp.eq.s32.totalorder %s18, 0
      %p141 = por %p139, %p140
      %p142 = scmp.ne.s32.totalorder %s131, %s134
      %p143 = scmp.eq.s32.totalorder %s23, 7
      %p144 = por %p142, %p143
      %p145 = scmp.ne.s32.totalorder %s134, %s135
      %p146 = scmp.eq.s32.totalorder %s23, 0
      %p147 = por %p145, %p146
      %p148 = scmp.ne.s32.totalorder %s134, %s135
      %p149 = scmp.eq.s32.totalorder %s24, 7
      %p150 = por %p148, %p149
      %p152 = scmp.ne.s32.totalorder %s135, %s151
      %p153 = scmp.eq.s32.totalorder %s24, 0
      %p154 = por %p152, %p153
      %p155 = scmp.le.s32.totalorder 1, %s18
      %p156 = scmp.lt.s32.totalorder %s18, 9
      %p157 = pnand %p155, %p156
      %p158 = pneg %p157
      // Predicated region
      $region9: #{tpu_custom_call.1} parent=5 // pred_check
        _
      $region10: #{tpu_custom_call.1} parent=5 // pred_check_branch
        %160 = sbr.rel (%p157) target = $region12
      $region11: #{tpu_custom_call.1} parent=5 // pred_region
        %s161 = ssub.s32 %s18, 1
      $region12: #{tpu_custom_call.1} parent=5 // pred_fallthru
        _
      %p162 = scmp.lt.s32.totalorder %s18, 8
      // Predicated region
      $region13: #{tpu_custom_call.1} parent=5 // pred_check
        %p163 = pneg %p162
      $region14: #{tpu_custom_call.1} parent=5 // pred_check_branch
        %165 = sbr.rel (%p163) target = $region16
      $region15: #{tpu_custom_call.1} parent=5 // pred_region
        // Predicated region
        $region17: #{tpu_custom_call.1} parent=15 // pred_check
          %p166 = pneg %p59
        $region18: #{tpu_custom_call.1} parent=15 // pred_check_branch
          %168 = sbr.rel (%p166) target = $region20
        $region19: #{tpu_custom_call.1} parent=15 // pred_region
          %s169 = sand.u32 %s49, 1
          %s170 = scalar_lea.sflag [#allocation4], %s169
          %s171 = sand.u32 %s49, 1
          %s172 = smul.addr %s171, 64
          %s173 = scalar_lea.vmem [#allocation3], %s172
          %s174 = smul.u32 8, %s25
          %s176 = ssub.s32 1024, 1024
          %177 = vsyncadd %s170, %s176
          %s178 = smul.addr %s174, 2
          %s179 = sadd.s32 %s27, %s178
          %s180 = smul.addr %s179, 128
          %s181 = scalar_lea.hbm %s0, %s180
          %s182 = sshll.u32 %s173, 4
          %s183 = int_to_ptr.vmem [resolvable:$true] %s182
          %188 = dma.hbm_to_vmem [thread:$0]  %s181, 1024, %s183, %s170, 256, 128, 8
        $region20: #{tpu_custom_call.1} parent=15 // pred_fallthru
          _
        // Predicated region
        $region21: #{tpu_custom_call.1} parent=15 // pred_check
          %p189 = pneg %p87
        $region22: #{tpu_custom_call.1} parent=15 // pred_check_branch
          %191 = sbr.rel (%p189) target = $region24
        $region23: #{tpu_custom_call.1} parent=15 // pred_region
          %s192 = sand.u32 %s77, 1
          %s193 = scalar_lea.sflag [#allocation7], %s192
          %s194 = sand.u32 %s77, 1
          %s195 = smul.addr %s194, 128
          %s196 = scalar_lea.vmem [#allocation6], %s195
          %s197 = smul.u32 16, %s26
          %s199 = ssub.s32 2048, 2048
          %200 = vsyncadd %s193, %s199
          %s201 = smul.addr %s197, 2
          %s202 = sadd.s32 %s27, %s201
          %s203 = smul.addr %s202, 128
          %s204 = scalar_lea.hbm %s1, %s203
          %s205 = sshll.u32 %s196, 4
          %s206 = int_to_ptr.vmem [resolvable:$true] %s205
          %211 = dma.hbm_to_vmem [thread:$0]  %s204, 2048, %s206, %s193, 256, 128, 8
        $region24: #{tpu_custom_call.1} parent=15 // pred_fallthru
          _
        // Predicated region
        $region25: #{tpu_custom_call.1} parent=15 // pred_check
          %p212 = pneg %p113
        $region26: #{tpu_custom_call.1} parent=15 // pred_check_branch
          %214 = sbr.rel (%p212) target = $region28
        $region27: #{tpu_custom_call.1} parent=15 // pred_region
          %p215 = scmp.lt.s32.totalorder %s26, 1
          %s216 = scalar_select %p215, %s26, 1
          %s217 = scalar_lea.vmem %s2, %s216
        $region28: #{tpu_custom_call.1} parent=15 // pred_fallthru
          _
      $region16: #{tpu_custom_call.1} parent=5 // pred_fallthru
        _
      %p218 = scmp.le.s32.totalorder 1, %s18
      %p219 = scmp.lt.s32.totalorder %s18, 9
      %p220 = pnand %p218, %p219
      %p221 = pneg %p220
      // Predicated region
      $region29: #{tpu_custom_call.1} parent=5 // pred_check
        _
      $region30: #{tpu_custom_call.1} parent=5 // pred_check_branch
        %223 = sbr.rel (%p220) target = $region32
      $region31: #{tpu_custom_call.1} parent=5 // pred_region
        %s224 = ssub.s32 %s18, 1
        %s225 = sand.u32 %s52, 1
        %s226 = scalar_lea.sflag [#allocation4], %s225
        %s227 = sand.u32 %s52, 1
        %s228 = smul.addr %s227, 64
        %s229 = scalar_lea.vmem [#allocation3], %s228
        // Predicated region
        $region33: #{tpu_custom_call.1} parent=31 // pred_check
          %p230 = pneg %p65
        $region34: #{tpu_custom_call.1} parent=31 // pred_check_branch
          %232 = sbr.rel (%p230) target = $region36
        $region35: #{tpu_custom_call.1} parent=31 // pred_region
          %233 = dma.done %s226, 1024
        $region36: #{tpu_custom_call.1} parent=31 // pred_fallthru
          _
        %s234 = sand.u32 %s80, 1
        %s235 = scalar_lea.sflag [#allocation7], %s234
        %s236 = sand.u32 %s80, 1
        %s237 = smul.addr %s236, 128
        %s238 = scalar_lea.vmem [#allocation6], %s237
        // Predicated region
        $region37: #{tpu_custom_call.1} parent=31 // pred_check
          %p239 = pneg %p93
        $region38: #{tpu_custom_call.1} parent=31 // pred_check_branch
          %241 = sbr.rel (%p239) target = $region40
        $region39: #{tpu_custom_call.1} parent=31 // pred_region
          %242 = dma.done %s235, 2048
        $region40: #{tpu_custom_call.1} parent=31 // pred_fallthru
          _
        %s243 = sand.u32 %s52, 1
        %s244 = scalar_lea.sflag [#allocation4], %s243
        %s245 = sand.u32 %s52, 1
        %s246 = smul.addr %s245, 64
        %s247 = scalar_lea.vmem [#allocation3], %s246
        %p248 = pneg %p65
        %p249 = pneg %p62
        %s250 = sand.u32 %s80, 1
        %s251 = scalar_lea.sflag [#allocation7], %s250
        %s252 = sand.u32 %s80, 1
        %s253 = smul.addr %s252, 128
        %s254 = scalar_lea.vmem [#allocation6], %s253
        %p255 = pneg %p93
        %p256 = pneg %p90
        %p257 = scmp.lt.s32.totalorder %s29, 1
        %s258 = scalar_select %p257, %s29, 1
        %s259 = scalar_lea.vmem %s2, %s258
        %p260 = pneg %p119
        %p261 = pneg %p116
        %p262 = pneg %p147
        %p263 = pneg %p144
        %s264 = sand.u32 %s134, 1
        %s265 = scalar_lea.sflag [#allocation5], %s264
        %s266 = sand.u32 %s134, 1
        %s267 = smul.addr %s266, 64
        %s268 = scalar_lea.vmem [#allocation8], %s267
        %s269 = smul.u32 8, %s28
        %s270 = smul.u32 16, %s29
        %p271 = scmp.lt.s32.totalorder %s29, 1
        %s272 = scalar_select %p271, %s29, 1
        %s273 = scalar_lea.vmem %s2, %s272
        %s274 = smul.u32 8, %s28
        %p275 = scmp.eq.s32.totalorder %s30, 0
        // Predicated region
        $region41: #{tpu_custom_call.1} parent=31 // pred_check
          %p276 = pneg %p275
        $region42: #{tpu_custom_call.1} parent=31 // pred_check_branch
          %278 = sbr.rel (%p276) target = $region44
        $region43: #{tpu_custom_call.1} parent=31 // pred_region
          %279 = vst [vmem:[#allocation2] sm:$0xff] 0.0
          %280 = vst [vmem:[#allocation2 + $0x8] sm:$0xff] 0.0
          %281 = vst [vmem:[#allocation2 + $0x10] sm:$0xff] 0.0
          %282 = vst [vmem:[#allocation2 + $0x18] sm:$0xff] 0.0
          %283 = vst [vmem:[#allocation2 + $0x20] sm:$0xff] 0.0
          %284 = vst [vmem:[#allocation2 + $0x28] sm:$0xff] 0.0
          %285 = vst [vmem:[#allocation2 + $0x30] sm:$0xff] 0.0
          %286 = vst [vmem:[#allocation2 + $0x38] sm:$0xff] 0.0
        $region44: #{tpu_custom_call.1} parent=31 // pred_fallthru
          _
        %v287 = vld [vmem:[#allocation2] sm:$0xff]
        %v288 = vld [vmem:[#allocation2 + $0x8] sm:$0xff]
        %v289 = vld [vmem:[#allocation2 + $0x10] sm:$0xff]
        %v290 = vld [vmem:[#allocation2 + $0x18] sm:$0xff]
        %v291 = vld [vmem:[#allocation2 + $0x20] sm:$0xff]
        %v292 = vld [vmem:[#allocation2 + $0x28] sm:$0xff]
        %v293 = vld [vmem:[#allocation2 + $0x30] sm:$0xff]
        %v294 = vld [vmem:[#allocation2 + $0x38] sm:$0xff]
        %v295 = vld [vmem:[%s229] sm:$0xff]
        %v296 = vld [vmem:[%s229 + $0x8] sm:$0xff]
        %v297 = vld [vmem:[%s229 + $0x10] sm:$0xff]
        %v298 = vld [vmem:[%s229 + $0x18] sm:$0xff]
        %v299 = vld [vmem:[%s229 + $0x20] sm:$0xff]
        %v300 = vld [vmem:[%s229 + $0x28] sm:$0xff]
        %v301 = vld [vmem:[%s229 + $0x30] sm:$0xff]
        %v302 = vld [vmem:[%s229 + $0x38] sm:$0xff]
        %v303 = vld [vmem:[%s238] sm:$0xff]
        %v304 = vld [vmem:[%s238 + $0x8] sm:$0xff]
        %v305 = vld [vmem:[%s238 + $0x10] sm:$0xff]
        %v306 = vld [vmem:[%s238 + $0x18] sm:$0xff]
        %v307 = vld [vmem:[%s238 + $0x20] sm:$0xff]
        %v308 = vld [vmem:[%s238 + $0x28] sm:$0xff]
        %v309 = vld [vmem:[%s238 + $0x30] sm:$0xff]
        %v310 = vld [vmem:[%s238 + $0x38] sm:$0xff]
        %v311 = vld [vmem:[%s238 + $0x40] sm:$0xff]
        %v312 = vld [vmem:[%s238 + $0x48] sm:$0xff]
        %v313 = vld [vmem:[%s238 + $0x50] sm:$0xff]
        %v314 = vld [vmem:[%s238 + $0x58] sm:$0xff]
        %v315 = vld [vmem:[%s238 + $0x60] sm:$0xff]
        %v316 = vld [vmem:[%s238 + $0x68] sm:$0xff]
        %v317 = vld [vmem:[%s238 + $0x70] sm:$0xff]
        %v318 = vld [vmem:[%s238 + $0x78] sm:$0xff]
        %319 = vmatprep.subr.mxu0 0.0
        %320 = vmatpush1.xpose.msra.mxu0 %v318
        %321 = vmatprep.subr.mxu0 0.0
        %322 = vmatpush1.xpose.msra.mxu0 %v317
        %323 = vmatprep.subr.mxu0 0.0
        %324 = vmatpush1.xpose.msra.mxu0 %v316
        %325 = vmatprep.subr.mxu0 0.0
        %326 = vmatpush1.xpose.msra.mxu0 %v315
        %327 = vmatprep.subr.mxu0 0.0
        %328 = vmatpush1.xpose.msra.mxu0 %v314
        %329 = vmatprep.subr.mxu0 0.0
        %330 = vmatpush1.xpose.msra.mxu0 %v313
        %331 = vmatprep.subr.mxu0 0.0
        %332 = vmatpush1.xpose.msra.mxu0 %v312
        %333 = vmatprep.subr.mxu0 0.0
        %334 = vmatpush1.xpose.msra.mxu0 %v311
        %335 = vmatprep.subr.mxu0 0.0
        %336 = vmatpush1.xpose.msra.mxu0 %v310
        %337 = vmatprep.subr.mxu0 0.0
        %338 = vmatpush1.xpose.msra.mxu0 %v309
        %339 = vmatprep.subr.mxu0 0.0
        %340 = vmatpush1.xpose.msra.mxu0 %v308
        %341 = vmatprep.subr.mxu0 0.0
        %342 = vmatpush1.xpose.msra.mxu0 %v307
        %343 = vmatprep.subr.mxu0 0.0
        %344 = vmatpush1.xpose.msra.mxu0 %v306
        %345 = vmatprep.subr.mxu0 0.0
        %346 = vmatpush1.xpose.msra.mxu0 %v305
        %347 = vmatprep.subr.mxu0 0.0
        %348 = vmatpush1.xpose.msra.mxu0 %v304
        %349 = vmatprep.subr.mxu0 0.0
        %350 = vmatpush1.xpose.msra.mxu0 %v303
        %351 = vmatprep.subr.mxu0 0.0
        %352 = vmatpush2.xpose.msra.mxu0 0.0
        %353 = vmatprep.subr.mxu0 0.0
        %354 = vmatpush2.xpose.msra.mxu0 0.0
        %355 = vmatprep.subr.mxu0 0.0
        %356 = vmatpush2.xpose.msra.mxu0 0.0
        %357 = vmatprep.subr.mxu0 0.0
        %358 = vmatpush2.xpose.msra.mxu0 0.0
        %359 = vmatprep.subr.mxu0 0.0
        %360 = vmatpush2.xpose.msra.mxu0 0.0
        %361 = vmatprep.subr.mxu0 0.0
        %362 = vmatpush2.xpose.msra.mxu0 0.0
        %363 = vmatprep.subr.mxu0 0.0
        %364 = vmatpush2.xpose.msra.mxu0 0.0
        %365 = vmatprep.subr.mxu0 0.0
        %366 = vmatpush2.xpose.msra.mxu0 0.0
        %367 = vmatprep.subr.mxu0 0.0
        %368 = vmatpush2.xpose.msra.mxu0 0.0
        %369 = vmatprep.subr.mxu0 0.0
        %370 = vmatpush2.xpose.msra.mxu0 0.0
        %371 = vmatprep.subr.mxu0 0.0
        %372 = vmatpush2.xpose.msra.mxu0 0.0
        %373 = vmatprep.subr.mxu0 0.0
        %374 = vmatpush2.xpose.msra.mxu0 0.0
        %375 = vmatprep.subr.mxu0 0.0
        %376 = vmatpush2.xpose.msra.mxu0 0.0
        %377 = vmatprep.subr.mxu0 0.0
        %378 = vmatpush2.xpose.msra.mxu0 0.0
        %379 = vmatprep.subr.mxu0 0.0
        %380 = vmatpush2.xpose.msra.mxu0 0.0
        %381 = vmatprep.subr.mxu0 0.0
        %382 = vmatpush2.xpose.msra.mxu0 0.0
        %383 = vmatprep.mubr.f32.mxu0 0.0
        %384 = vmatmul.mubr.f32.gmra.mxu0 %v295
        %v385 = vpop.f32.mrf.mxu0
        %v386 = vadd.f32 0.0, %v385
        %v387 = vpop.f32.mrf.mxu0
        %388 = vmatprep.mubr.f32.mxu0 0.0
        %389 = vmatmul.mubr.f32.gmra.mxu0 %v296
        %v390 = vpop.f32.mrf.mxu0
        %v391 = vadd.f32 0.0, %v390
        %v392 = vpop.f32.mrf.mxu0
        %393 = vmatprep.mubr.f32.mxu0 0.0
        %394 = vmatmul.mubr.f32.gmra.mxu0 %v297
        %v395 = vpop.f32.mrf.mxu0
        %v396 = vadd.f32 0.0, %v395
        %v397 = vpop.f32.mrf.mxu0
        %398 = vmatprep.mubr.f32.mxu0 0.0
        %399 = vmatmul.mubr.f32.gmra.mxu0 %v298
        %v400 = vpop.f32.mrf.mxu0
        %v401 = vadd.f32 0.0, %v400
        %v402 = vpop.f32.mrf.mxu0
        %403 = vmatprep.mubr.f32.mxu0 0.0
        %404 = vmatmul.mubr.f32.gmra.mxu0 %v299
        %v405 = vpop.f32.mrf.mxu0
        %v406 = vadd.f32 0.0, %v405
        %v407 = vpop.f32.mrf.mxu0
        %408 = vmatprep.mubr.f32.mxu0 0.0
        %409 = vmatmul.mubr.f32.gmra.mxu0 %v300
        %v410 = vpop.f32.mrf.mxu0
        %v411 = vadd.f32 0.0, %v410
        %v412 = vpop.f32.mrf.mxu0
        %413 = vmatprep.mubr.f32.mxu0 0.0
        %414 = vmatmul.mubr.f32.gmra.mxu0 %v301
        %v415 = vpop.f32.mrf.mxu0
        %v416 = vadd.f32 0.0, %v415
        %v417 = vpop.f32.mrf.mxu0
        %418 = vmatprep.mubr.f32.mxu0 0.0
        %419 = vmatmul.mubr.f32.gmra.mxu0 %v302
        %v420 = vpop.f32.mrf.mxu0
        %v421 = vadd.f32 0.0, %v420
        %v422 = vpop.f32.mrf.mxu0
        %423 = vdwg.mxu0
        %v424 = vadd.f32 %v287, %v386
        %v425 = vadd.f32 %v288, %v391
        %v426 = vadd.f32 %v289, %v396
        %v427 = vadd.f32 %v290, %v401
        %v428 = vadd.f32 %v291, %v406
        %v429 = vadd.f32 %v292, %v411
        %v430 = vadd.f32 %v293, %v416
        %v431 = vadd.f32 %v294, %v421
        %432 = vst [vmem:[#allocation2] sm:$0xff] %v424
        %433 = vst [vmem:[#allocation2 + $0x8] sm:$0xff] %v425
        %434 = vst [vmem:[#allocation2 + $0x10] sm:$0xff] %v426
        %435 = vst [vmem:[#allocation2 + $0x18] sm:$0xff] %v427
        %436 = vst [vmem:[#allocation2 + $0x20] sm:$0xff] %v428
        %437 = vst [vmem:[#allocation2 + $0x28] sm:$0xff] %v429
        %438 = vst [vmem:[#allocation2 + $0x30] sm:$0xff] %v430
        %439 = vst [vmem:[#allocation2 + $0x38] sm:$0xff] %v431
        %p440 = scmp.eq.s32.totalorder %s30, 1
        // Predicated region
        $region45: #{tpu_custom_call.1} parent=31 // pred_check
          %p441 = pneg %p440
        $region46: #{tpu_custom_call.1} parent=31 // pred_check_branch
          %443 = sbr.rel (%p441) target = $region48
        $region47: #{tpu_custom_call.1} parent=31 // pred_region
          %v444 = vld [vmem:[#allocation2] sm:$0xff]
          %v445 = vld [vmem:[#allocation2 + $0x8] sm:$0xff]
          %v446 = vld [vmem:[#allocation2 + $0x10] sm:$0xff]
          %v447 = vld [vmem:[#allocation2 + $0x18] sm:$0xff]
          %v448 = vld [vmem:[#allocation2 + $0x20] sm:$0xff]
          %v449 = vld [vmem:[#allocation2 + $0x28] sm:$0xff]
          %v450 = vld [vmem:[#allocation2 + $0x30] sm:$0xff]
          %v451 = vld [vmem:[#allocation2 + $0x38] sm:$0xff]
          %v452 = vld [vmem:[%s273] sm:$0x1]
          %v454 = vlaneseq
          %v455 = vshrl.u32 %v454, 7
          %v456 = vsub.s32 0, %v455
          %v457 = vrot.slane %v452, %v456
          %v459 = vadd.f32 %v444, %v457
          %v460 = vadd.f32 %v445, %v457
          %v461 = vadd.f32 %v446, %v457
          %v462 = vadd.f32 %v447, %v457
          %v463 = vadd.f32 %v448, %v457
          %v464 = vadd.f32 %v449, %v457
          %v465 = vadd.f32 %v450, %v457
          %v466 = vadd.f32 %v451, %v457
          %467 = vst [vmem:[%s268] sm:$0xff] %v459
          %468 = vst [vmem:[%s268 + $0x8] sm:$0xff] %v460
          %469 = vst [vmem:[%s268 + $0x10] sm:$0xff] %v461
          %470 = vst [vmem:[%s268 + $0x18] sm:$0xff] %v462
          %471 = vst [vmem:[%s268 + $0x20] sm:$0xff] %v463
          %472 = vst [vmem:[%s268 + $0x28] sm:$0xff] %v464
          %473 = vst [vmem:[%s268 + $0x30] sm:$0xff] %v465
          %474 = vst [vmem:[%s268 + $0x38] sm:$0xff] %v466
        $region48: #{tpu_custom_call.1} parent=31 // pred_fallthru
          _
        %s475 = sand.u32 %s134, 1
        %s476 = scalar_lea.sflag [#allocation5], %s475
        %s477 = sand.u32 %s134, 1
        %s478 = smul.addr %s477, 64
        %s479 = scalar_lea.vmem [#allocation8], %s478
        // Predicated region
        $region49: #{tpu_custom_call.1} parent=31 // pred_check
          %p480 = pneg %p144
        $region50: #{tpu_custom_call.1} parent=31 // pred_check_branch
          %482 = sbr.rel (%p480) target = $region52
        $region51: #{tpu_custom_call.1} parent=31 // pred_region
          %s483 = smul.u32 8, %s28
          %s485 = ssub.s32 1024, 1024
          %486 = vsyncadd %s476, %s485
          %s487 = smul.addr %s483, 2
          %s488 = sadd.s32 %s29, %s487
          %s489 = smul.addr %s488, 128
          %s490 = scalar_lea.hbm %s3, %s489
          %s491 = sshll.u32 %s479, 4
          %s492 = int_to_ptr.vmem [resolvable:$true] %s491
          %497 = dma.vmem_to_hbm [thread:$0]  %s492, 1024, %s490, %s476, 128, 256, 8
        $region52: #{tpu_custom_call.1} parent=31 // pred_fallthru
          _
      $region32: #{tpu_custom_call.1} parent=5 // pred_fallthru
        _
      %p498 = scmp.le.s32.totalorder 2, %s18
      // Predicated region
      $region53: #{tpu_custom_call.1} parent=5 // pred_check
        %p499 = pneg %p498
      $region54: #{tpu_custom_call.1} parent=5 // pred_check_branch
        %501 = sbr.rel (%p499) target = $region56
      $region55: #{tpu_custom_call.1} parent=5 // pred_region
        %s502 = ssub.s32 %s18, 2
        // Predicated region
        $region57: #{tpu_custom_call.1} parent=55 // pred_check
          %p503 = pneg %p150
        $region58: #{tpu_custom_call.1} parent=55 // pred_check_branch
          %505 = sbr.rel (%p503) target = $region60
        $region59: #{tpu_custom_call.1} parent=55 // pred_region
          %s506 = sand.u32 %s135, 1
          %s507 = scalar_lea.sflag [#allocation5], %s506
          %s508 = sand.u32 %s135, 1
          %s509 = smul.addr %s508, 64
          %s510 = scalar_lea.vmem [#allocation8], %s509
          %511 = dma.done %s507, 1024
        $region60: #{tpu_custom_call.1} parent=55 // pred_fallthru
          _
      $region56: #{tpu_custom_call.1} parent=5 // pred_fallthru
        _
    $region6: #{tpu_custom_call.1} parent=1 // loop_footer
      %s22 = sadd.s32 1, %s18
    $region7: #{tpu_custom_call.1} parent=1 // loop_footer_branch
      %17 = sbr.rel target = $region3
    $region8: #{tpu_custom_call.1} parent=1 // loop_exit
      _
    %512 = vsyncpa [#allocation4], 1
    %s513 = scalar_lea.sflag [#allocation4], 1
    %514 = vsyncpa %s513, 1
    %515 = vsyncpa [#allocation7], 1
    %s516 = scalar_lea.sflag [#allocation7], 1
    %517 = vsyncpa %s516, 1
    %518 = vsyncpa [#allocation5], 1
    %s519 = scalar_lea.sflag [#allocation5], 1
    %520 = vsyncpa %s519, 1

</llo_original>
